<compile_context>
chip_gen: v6e
topology: v6e:2x2x1
jax: 0.10.0
libtpu: 0.0.40
codegen_flags: <defaults>
</compile_context>

<pallas_src>
import functools

import jax
import jax.numpy as jnp
from jax.experimental import pallas as pl
from jax.experimental.pallas import tpu as pltpu

SMOOTH = 1e-5
_LANE = 128
_CHUNK = 1024          # inner-loop chunk (lanes); multiple of 128


def _round_up(x, m):
    return (x + m - 1) // m * m


def _vmem_lane_bytes(n, c, itemsize):
    """VMEM bytes per spatial lane for an (n, c, tile_s) block, incl. sublane padding."""
    granule = 8 * (4 // itemsize)          # f32/i32 -> 8, bf16 -> 16, int8 -> 32
    return n * _round_up(c, granule) * itemsize


def _num_tensorcores():
    """2 on megacore parts (v4 / v5p / v7x), 1 on single-TC parts (v5e / v6e)."""
    try:
        kind = jax.devices()[0].device_kind.lower()
    except Exception:
        return 1
    if any(t in kind for t in ("lite", "v5e", "v6e")):
        return 1
    if any(t in kind for t in ("v4", "v5p", "7x", "v7")):
        return 2
    return 1


def _vmem_capacity_bytes():
    try:
        return int(pltpu.get_tpu_info().vmem_capacity_bytes)
    except Exception:
        return 64 * 1024 * 1024            # conservative: v7x per-TensorCore VMEM


def _choose_grid(S, per_s_bytes, block_budget, max_tile_s, n_cores):
    """Pick (tile_s, n_par, n_inner, chunk) for the (n_par, n_inner) grid."""
    # Largest tile whose double-buffered blocks fit the VMEM budget.
    cap = max(_LANE, (block_budget // max(per_s_bytes, 1)) // _LANE * _LANE)
    tile_s = min(cap, max(_LANE, max_tile_s // _LANE * _LANE), _round_up(S, _LANE))
    gran = _CHUNK if tile_s >= _CHUNK else _LANE
    if tile_s >= _CHUNK:
        tile_s = tile_s // gran * gran     # keep the inner chunk at full width

    # Prefer >= ~4 grid steps per core so the BlockSpec pipeline overlaps DMA with
    # compute, but never drop below 8192 lanes (per-grid-step overhead amortization).
    min_tile = min(8192, tile_s)
    want_tiles = 4 * n_cores
    if S > want_tiles * min_tile:
        tile_s = max(min_tile, min(tile_s, _round_up(-(-S // want_tiles), gran)))

    n_par = n_cores
    num_tiles = -(-S // tile_s)
    if n_par > 1:
        if num_tiles < n_par:
            n_par = 1
        else:
            num_tiles = _round_up(num_tiles, n_par)
            tile_s = _round_up(-(-S // num_tiles), gran)
            if (num_tiles - 1) * tile_s >= S:   # would create a fully out-of-range tile
                n_par = 1
                num_tiles = -(-S // tile_s)
    n_inner = num_tiles // n_par

    # Inner chunk: largest multiple of 128 that divides tile_s, capped at _CHUNK.
    k = tile_s // _LANE
    m = 1
    for cand in range(min(_CHUNK // _LANE, k), 0, -1):
        if k % cand == 0:
            m = cand
            break
    chunk = m * _LANE
    return tile_s, n_par, n_inner, chunk


def _dice_sums_kernel(*refs, has_mask, need_valid, chunk, s_valid):
    if has_mask:
        logits_ref, target_ref, mask_ref, inter_ref, union_ref, inter_acc, union_acc = refs
    else:
        logits_ref, target_ref, inter_ref, union_ref, inter_acc, union_acc = refs
        mask_ref = None

    s = pl.program_id(1)

    @pl.when(s == 0)
    def _():
        inter_acc[...] = jnp.zeros_like(inter_acc)
        union_acc[...] = jnp.zeros_like(union_acc)

    N, C, TS = logits_ref.shape
    n_chunks = TS // chunk                       # static
    unroll = min(4, n_chunks)

    # Loop-invariant values hoisted out of the chunk loop (JAX does not CSE broadcasts).
    cls = jax.lax.broadcasted_iota(jnp.int32, (N, C, chunk), 1)
    if need_valid:
        lane = jax.lax.broadcasted_iota(jnp.int32, (1, 1, chunk), 2)
        base = (pl.program_id(0) * pl.num_programs(1) + s) * TS

    def body(k, carry):
        ip, up = carry
        off = pl.multiple_of(k * chunk, chunk)

        x = logits_ref[:, :, pl.ds(off, chunk)].astype(jnp.float32)    # (N, C, chunk)
        t = target_ref[:, :, pl.ds(off, chunk)].astype(jnp.int32)      # (N, 1, chunk)

        if need_valid:
            valid = (base + off + lane) < s_valid                      # (1, 1, chunk)
            # Clamp the out-of-range tail BEFORE exp: OOB block reads are undefined and
            # masking by multiply alone could produce inf * 0 = NaN.
            x = jnp.where(valid, x, 0.0)

        # Channel softmax; only the (N, 1, chunk) denominator is divided (exact divide,
        # amortized over C; approx reciprocal would drift ~2e-4, past the 1e-5 tolerance).
        mx = jnp.max(x, axis=1, keepdims=True)
        e = jnp.exp(x - mx)
        inv = 1.0 / jnp.sum(e, axis=1, keepdims=True)                  # (N, 1, chunk)

        hit = t == cls                                                 # one-hot membership

        if has_mask:
            m = mask_ref[:, :, pl.ds(off, chunk)].astype(jnp.float32)  # (N, 1, chunk)
            if need_valid:
                m = jnp.where(valid, m, 0.0)
        elif need_valid:
            m = valid.astype(jnp.float32)
        else:
            m = None

        w = inv if m is None else m * inv
        ew = e * w                                                     # softmax * mask
        inter_c = jnp.where(hit, ew, 0.0)                              # pred*onehot*mask
        if m is None:
            union_c = jnp.where(hit, ew + 1.0, ew)                     # pred + onehot
        else:
            union_c = ew + jnp.where(hit, m, 0.0)                      # (pred+onehot)*mask

        # Fold the chunk onto 128 lanes with aligned VPU adds (single XLU reduce later).
        # (An MXU ones-matmul fold could offload these adds but loses f32 exactness.)
        for j in range(chunk // _LANE):
            sl = slice(j * _LANE, (j + 1) * _LANE)
            ip = ip + inter_c[:, :, sl]
            up = up + union_c[:, :, sl]
        return ip, up

    zeros = jnp.zeros((N, C, _LANE), jnp.float32)
    ip, up = jax.lax.fori_loop(0, n_chunks, body, (zeros, zeros), unroll=unroll)
    inter_acc[...] += ip
    union_acc[...] += up

    # Single cross-lane (XLU) reduction + narrow (1, N, C) store per parallel slice.
    @pl.when(s == pl.num_programs(1) - 1)
    def _():
        inter_ref[...] = inter_acc[...].sum(axis=2)[None]
        union_ref[...] = union_acc[...].sum(axis=2)[None]


def mask_dice_loss(logits, target, mask=None, smooth=SMOOTH, max_tile_s=65536):
    """Equivalent of mask_DiceLoss.forward for logits with C > 1 (softmax path)."""
    N, C = int(logits.shape[0]), int(logits.shape[1])
    # TODO(synk): C == 1 sigmoid / implicit two-class path of get_probability not implemented.
    assert C > 1, "only the softmax (C > 1) path is implemented"

    logits = jnp.reshape(logits, (N, C, -1))
    if logits.dtype != jnp.bfloat16:               # bf16 accepted to halve logits DMA
        logits = logits.astype(jnp.float32)        # (no VMEM savings for small C)
    S = int(logits.shape[-1])

    # Narrow the target for DMA (class ids fit int8 for C <= 127); widened in-kernel.
    tgt_dtype = jnp.int8 if C <= 127 else jnp.int32
    target = jnp.reshape(target, (N, 1, S)).astype(tgt_dtype)

    has_mask = mask is not None
    if has_mask:
        mask = jnp.reshape(mask, (N, 1, S))
        if mask.dtype != jnp.bfloat16:             # mask may carry non-binary weights:
            mask = mask.astype(jnp.float32)        # keep caller precision unless bf16 given

    # ---- generation-aware VMEM budget / grid selection --------------------------------
    n_cores = _num_tensorcores()
    vmem_cap = _vmem_capacity_bytes()                          # 64 MiB v7x, 128 MiB v5e/v6e
    vmem_limit = max(32 << 20, min(vmem_cap - (8 << 20), 100 << 20))
    block_budget = vmem_limit - (6 << 20)                      # slack for chunk temporaries

    per_s_bytes = 2 * (                                        # double-buffered input blocks
        _vmem_lane_bytes(N, C, logits.dtype.itemsize)
        + _vmem_lane_bytes(N, 1, target.dtype.itemsize)
        + (_vmem_lane_bytes(N, 1, mask.dtype.itemsize) if has_mask else 0))

    tile_s, n_par, n_inner, chunk = _choose_grid(S, per_s_bytes, block_budget,
                                                 max_tile_s, n_cores)
    num_tiles = n_par * n_inner
    need_valid = (num_tiles * tile_s != S)         # partial last tile masked in-kernel

    kernel = functools.partial(_dice_sums_kernel, has_mask=has_mask,
                               need_valid=need_valid, chunk=chunk, s_valid=S)

    spatial_map = lambda p, s: (0, 0, p * n_inner + s)
    in_specs = [pl.BlockSpec((N, C, tile_s), spatial_map),
                pl.BlockSpec((N, 1, tile_s), spatial_map)]
    inputs = [logits, target]
    if has_mask:
        in_specs.append(pl.BlockSpec((N, 1, tile_s), spatial_map))
        inputs.append(mask)

    bytes_accessed = (N * C * S * logits.dtype.itemsize
                      + N * S * target.dtype.itemsize
                      + (N * S * mask.dtype.itemsize if has_mask else 0)
                      + 2 * n_par * N * C * 4)
    cost = pl.CostEstimate(flops=10 * N * C * S, transcendentals=N * C * S,
                           bytes_accessed=bytes_accessed)

    inter_p, union_p = pl.pallas_call(
        kernel,
        out_shape=(jax.ShapeDtypeStruct((n_par, N, C), jnp.float32),
                   jax.ShapeDtypeStruct((n_par, N, C), jnp.float32)),
        grid_spec=pltpu.PrefetchScalarGridSpec(
            num_scalar_prefetch=0,
            grid=(n_par, n_inner),
            in_specs=in_specs,
            out_specs=[pl.BlockSpec((1, N, C), lambda p, s: (p, 0, 0)),
                       pl.BlockSpec((1, N, C), lambda p, s: (p, 0, 0))],
            scratch_shapes=[pltpu.VMEM((N, C, _LANE), jnp.float32),
                            pltpu.VMEM((N, C, _LANE), jnp.float32)]),
        compiler_params=pltpu.CompilerParams(
            dimension_semantics=("parallel", "arbitrary"),
            vmem_limit_bytes=int(vmem_limit)),
        cost_estimate=cost,
    )(*inputs)

    inter = inter_p.sum(axis=0)                    # (N, C) partials from the parallel axis
    union = union_p.sum(axis=0)
    dice = (2.0 * inter + smooth) / (union + smooth)
    return 1.0 - dice.mean()


def mask_dice_loss_ref(logits, target, mask=None, smooth=SMOOTH):
    """Pure-JAX reference (mirrors the PyTorch forward)."""
    N, C = logits.shape[0], logits.shape[1]
    logits = jnp.reshape(logits, (N, C, -1)).astype(jnp.float32)
    target = jnp.reshape(target, (N, 1, -1)).astype(jnp.int32)
    pred = jax.nn.softmax(logits, axis=1)
    onehot = jax.nn.one_hot(target[:, 0, :], C, dtype=jnp.float32)  # (N, S, C)
    onehot = jnp.transpose(onehot, (0, 2, 1))                       # (N, C, S)
    inter = pred * onehot
    union = pred + onehot
    if mask is not None:
        mask = jnp.reshape(mask, (N, 1, -1)).astype(jnp.float32)
        inter = (inter * mask).sum(axis=2)
        union = (union * mask).sum(axis=2)
    else:
        inter = inter.sum(axis=2)
        union = union.sum(axis=2)
    dice = (2.0 * inter + smooth) / (union + smooth)
    return 1.0 - dice.mean()


if __name__ == "__main__":
    N, C, H, W = 2, 4, 16, 16

    # Module keeps class_weights but never uses them in forward; created for __init__ parity.
    class_weights = jnp.ones((1, C), jnp.float32)  # unused in forward

    key = jax.random.PRNGKey(0)
    k1, k2, k3 = jax.random.split(key, 3)
    logits = jax.random.normal(k1, (N, C, H, W), dtype=jnp.float32)
    target = jax.random.randint(k2, (N, 1, H, W), 0, C, dtype=jnp.int32)
    mask = (jax.random.uniform(k3, (N, 1, H, W)) > 0.3).astype(jnp.float32)

    # Unmasked path.
    loss = jax.block_until_ready(mask_dice_loss(logits, target))
    loss_ref = jax.block_until_ready(mask_dice_loss_ref(logits, target))
    assert jnp.allclose(loss, loss_ref, rtol=1e-5, atol=1e-5), (loss, loss_ref)

    # Masked path.
    loss_m = jax.block_until_ready(mask_dice_loss(logits, target, mask))
    loss_m_ref = jax.block_until_ready(mask_dice_loss_ref(logits, target, mask))
    assert jnp.allclose(loss_m, loss_m_ref, rtol=1e-5, atol=1e-5), (loss_m, loss_m_ref)

    # Ragged spatial size (no wrapper-side padding; in-kernel tail masking), no mask.
    Hr, Wr = 10, 10
    lr = jax.random.normal(k1, (N, C, Hr, Wr), dtype=jnp.float32)
    tr = jax.random.randint(k2, (N, 1, Hr, Wr), 0, C, dtype=jnp.int32)
    mr = (jax.random.uniform(k3, (N, 1, Hr, Wr)) > 0.3).astype(jnp.float32)
    loss_r = jax.block_until_ready(mask_dice_loss(lr, tr))
    loss_r_ref = jax.block_until_ready(mask_dice_loss_ref(lr, tr))
    assert jnp.allclose(loss_r, loss_r_ref, rtol=1e-5, atol=1e-5), (loss_r, loss_r_ref)

    # Ragged + mask (exercises combined user-mask * validity-mask path).
    loss_rm = jax.block_until_ready(mask_dice_loss(lr, tr, mr))
    loss_rm_ref = jax.block_until_ready(mask_dice_loss_ref(lr, tr, mr))
    assert jnp.allclose(loss_rm, loss_rm_ref, rtol=1e-5, atol=1e-5), (loss_rm, loss_rm_ref)

    print("KERNEL_OK")
</pallas_src>

<mosaic_0001>
module attributes {stable_mosaic.version = 11 : i64} {
  func.func @_dice_sums_kernel(%arg0: i32, %arg1: i32, %arg2: memref<2x4x256xf32, #tpu.memory_space<vmem>>, %arg3: memref<2x1x256xi8, #tpu.memory_space<vmem>>, %arg4: memref<1x2x4xf32, #tpu.memory_space<vmem>>, %arg5: memref<1x2x4xf32, #tpu.memory_space<vmem>>, %arg6: memref<2x4x128xf32, #tpu.memory_space<vmem>>, %arg7: memref<2x4x128xf32, #tpu.memory_space<vmem>>) attributes {dimension_semantics = [#tpu.dimension_semantics<parallel>, #tpu.dimension_semantics<arbitrary>], iteration_bounds = array<i64: 1, 1>, scalar_prefetch = 0 : i64, scratch_operands = 2 : i64, tpu.core_type = #tpu.core_type<tc>, window_params = [{transform_indices = @transform_0, window_bounds = array<i64: 2, 4, 256>}, {transform_indices = @transform_1, window_bounds = array<i64: 2, 1, 256>}, {transform_indices = @transform_2, window_bounds = array<i64: 1, 2, 4>}, {transform_indices = @transform_3, window_bounds = array<i64: 1, 2, 4>}]} {
    %c0_i32 = arith.constant 0 : i32
    %0 = arith.cmpi eq, %arg1, %c0_i32 : i32
    %1 = arith.extui %0 : i1 to i32
    %c0_i32_0 = arith.constant 0 : i32
    %2 = arith.cmpi ne, %1, %c0_i32_0 : i32
    scf.if %2 {
      %cst_24 = arith.constant 0.000000e+00 : f32
      %47 = vector.broadcast %cst_24 : f32 to vector<2x4x128xf32>
      %c0_25 = arith.constant 0 : index
      %c0_26 = arith.constant 0 : index
      %c0_27 = arith.constant 0 : index
      %48 = vector.load %arg6[%c0_25, %c0_26, %c0_27] : memref<2x4x128xf32, #tpu.memory_space<vmem>>, vector<2x4x128xf32>
      tpu.vector_store %arg6[%c0_25, %c0_26, %c0_27], %47 {strides = array<i32>} : memref<2x4x128xf32, #tpu.memory_space<vmem>>, vector<2x4x128xf32>,
      %cst_28 = arith.constant 0.000000e+00 : f32
      %49 = vector.broadcast %cst_28 : f32 to vector<2x4x128xf32>
      %c0_29 = arith.constant 0 : index
      %c0_30 = arith.constant 0 : index
      %c0_31 = arith.constant 0 : index
      %50 = vector.load %arg7[%c0_29, %c0_30, %c0_31] : memref<2x4x128xf32, #tpu.memory_space<vmem>>, vector<2x4x128xf32>
      tpu.vector_store %arg7[%c0_29, %c0_30, %c0_31], %49 {strides = array<i32>} : memref<2x4x128xf32, #tpu.memory_space<vmem>>, vector<2x4x128xf32>,
    } else {
    }
    %3 = tpu.iota {dimensions = array<i32: 1>} : vector<2x4x256xi32>
    %cst = arith.constant 0.000000e+00 : f32
    %4 = vector.broadcast %cst : f32 to vector<2x4x128xf32>
    %c0_i32_1 = arith.constant 0 : i32
    %c256_i32 = arith.constant 256 : i32
    %5 = arith.muli %c0_i32_1, %c256_i32 : i32
    %6 = tpu.assume_multiple %5, 256 : i32
    %c0 = arith.constant 0 : index
    %c0_2 = arith.constant 0 : index
    %7 = arith.index_cast %6 : i32 to index
    %8 = vector.load %arg2[%c0, %c0_2, %7] : memref<2x4x256xf32, #tpu.memory_space<vmem>>, vector<2x4x256xf32>
    %c0_3 = arith.constant 0 : index
    %c0_4 = arith.constant 0 : index
    %9 = arith.index_cast %6 : i32 to index
    %10 = vector.load %arg3[%c0_3, %c0_4, %9] : memref<2x1x256xi8, #tpu.memory_space<vmem>>, vector<2x1x256xi8>
    %11 = arith.extsi %10 : vector<2x1x256xi8> to vector<2x1x256xi32>
    %cst_5 = arith.constant dense<0xFF800000> : vector<2x256xf32>
    %12 = vector.multi_reduction <maximumf>, %8, %cst_5 [1] : vector<2x4x256xf32> to vector<2x256xf32>
    %13 = vector.shape_cast %12 : vector<2x256xf32> to vector<2x1x256xf32>
    %14 = vector.broadcast %13 : vector<2x1x256xf32> to vector<2x4x256xf32>
    %15 = arith.subf %8, %14 : vector<2x4x256xf32>
    %16 = math.exp %15 : vector<2x4x256xf32>
    %cst_6 = arith.constant dense<0.000000e+00> : vector<2x256xf32>
    %17 = vector.multi_reduction <add>, %16, %cst_6 [1] : vector<2x4x256xf32> to vector<2x256xf32>
    %18 = vector.shape_cast %17 : vector<2x256xf32> to vector<2x1x256xf32>
    %cst_7 = arith.constant 1.000000e+00 : f32
    %19 = vector.broadcast %cst_7 : f32 to vector<2x1x256xf32>
    %20 = arith.divf %19, %18 : vector<2x1x256xf32>
    %21 = vector.broadcast %11 : vector<2x1x256xi32> to vector<2x4x256xi32>
    %22 = arith.cmpi eq, %21, %3 : vector<2x4x256xi32>
    %23 = vector.broadcast %20 : vector<2x1x256xf32> to vector<2x4x256xf32>
    %24 = arith.mulf %16, %23 : vector<2x4x256xf32>
    %cst_8 = arith.constant 0.000000e+00 : f32
    %25 = vector.broadcast %cst_8 : f32 to vector<2x4x256xf32>
    %26 = arith.select %22, %24, %25 : vector<2x4x256xi1>, vector<2x4x256xf32>
    %cst_9 = arith.constant 1.000000e+00 : f32
    %27 = vector.broadcast %cst_9 : f32 to vector<2x4x256xf32>
    %28 = arith.addf %24, %27 : vector<2x4x256xf32>
    %29 = arith.select %22, %28, %24 : vector<2x4x256xi1>, vector<2x4x256xf32>
    %30 = vector.extract_strided_slice %26 {offsets = [0, 0, 0], sizes = [2, 4, 128], strides = [1, 1, 1]} : vector<2x4x256xf32> to vector<2x4x128xf32>
    %31 = arith.addf %4, %30 : vector<2x4x128xf32>
    %32 = vector.extract_strided_slice %29 {offsets = [0, 0, 0], sizes = [2, 4, 128], strides = [1, 1, 1]} : vector<2x4x256xf32> to vector<2x4x128xf32>
    %33 = arith.addf %4, %32 : vector<2x4x128xf32>
    %34 = vector.extract_strided_slice %26 {offsets = [0, 0, 128], sizes = [2, 4, 128], strides = [1, 1, 1]} : vector<2x4x256xf32> to vector<2x4x128xf32>
    %35 = arith.addf %31, %34 : vector<2x4x128xf32>
    %36 = vector.extract_strided_slice %29 {offsets = [0, 0, 128], sizes = [2, 4, 128], strides = [1, 1, 1]} : vector<2x4x256xf32> to vector<2x4x128xf32>
    %37 = arith.addf %33, %36 : vector<2x4x128xf32>
    %c1_i32 = arith.constant 1 : i32
    %c0_10 = arith.constant 0 : index
    %c0_11 = arith.constant 0 : index
    %c0_12 = arith.constant 0 : index
    %38 = vector.load %arg6[%c0_10, %c0_11, %c0_12] : memref<2x4x128xf32, #tpu.memory_space<vmem>>, vector<2x4x128xf32>
    %39 = arith.addf %38, %35 : vector<2x4x128xf32>
    %c0_13 = arith.constant 0 : index
    %c0_14 = arith.constant 0 : index
    %c0_15 = arith.constant 0 : index
    %40 = vector.load %arg6[%c0_13, %c0_14, %c0_15] : memref<2x4x128xf32, #tpu.memory_space<vmem>>, vector<2x4x128xf32>
    tpu.vector_store %arg6[%c0_13, %c0_14, %c0_15], %39 {strides = array<i32>} : memref<2x4x128xf32, #tpu.memory_space<vmem>>, vector<2x4x128xf32>,
    %c0_16 = arith.constant 0 : index
    %c0_17 = arith.constant 0 : index
    %c0_18 = arith.constant 0 : index
    %41 = vector.load %arg7[%c0_16, %c0_17, %c0_18] : memref<2x4x128xf32, #tpu.memory_space<vmem>>, vector<2x4x128xf32>
    %42 = arith.addf %41, %37 : vector<2x4x128xf32>
    %c0_19 = arith.constant 0 : index
    %c0_20 = arith.constant 0 : index
    %c0_21 = arith.constant 0 : index
    %43 = vector.load %arg7[%c0_19, %c0_20, %c0_21] : memref<2x4x128xf32, #tpu.memory_space<vmem>>, vector<2x4x128xf32>
    tpu.vector_store %arg7[%c0_19, %c0_20, %c0_21], %42 {strides = array<i32>} : memref<2x4x128xf32, #tpu.memory_space<vmem>>, vector<2x4x128xf32>,
    %c0_i32_22 = arith.constant 0 : i32
    %44 = arith.cmpi eq, %arg1, %c0_i32_22 : i32
    %45 = arith.extui %44 : i1 to i32
    %c0_i32_23 = arith.constant 0 : i32
    %46 = arith.cmpi ne, %45, %c0_i32_23 : i32
    scf.if %46 {
      %c0_24 = arith.constant 0 : index
      %c0_25 = arith.constant 0 : index
      %c0_26 = arith.constant 0 : index
      %47 = vector.load %arg6[%c0_24, %c0_25, %c0_26] : memref<2x4x128xf32, #tpu.memory_space<vmem>>, vector<2x4x128xf32>
      %cst_27 = arith.constant dense<0.000000e+00> : vector<2x4xf32>
      %48 = vector.multi_reduction <add>, %47, %cst_27 [2] : vector<2x4x128xf32> to vector<2x4xf32>
      %49 = vector.shape_cast %48 : vector<2x4xf32> to vector<1x2x4xf32>
      %c0_28 = arith.constant 0 : index
      %c0_29 = arith.constant 0 : index
      %c0_30 = arith.constant 0 : index
      %50 = vector.load %arg4[%c0_28, %c0_29, %c0_30] : memref<1x2x4xf32, #tpu.memory_space<vmem>>, vector<1x2x4xf32>
      tpu.vector_store %arg4[%c0_28, %c0_29, %c0_30], %49 {strides = array<i32>} : memref<1x2x4xf32, #tpu.memory_space<vmem>>, vector<1x2x4xf32>,
      %c0_31 = arith.constant 0 : index
      %c0_32 = arith.constant 0 : index
      %c0_33 = arith.constant 0 : index
      %51 = vector.load %arg7[%c0_31, %c0_32, %c0_33] : memref<2x4x128xf32, #tpu.memory_space<vmem>>, vector<2x4x128xf32>
      %cst_34 = arith.constant dense<0.000000e+00> : vector<2x4xf32>
      %52 = vector.multi_reduction <add>, %51, %cst_34 [2] : vector<2x4x128xf32> to vector<2x4xf32>
      %53 = vector.shape_cast %52 : vector<2x4xf32> to vector<1x2x4xf32>
      %c0_35 = arith.constant 0 : index
      %c0_36 = arith.constant 0 : index
      %c0_37 = arith.constant 0 : index
      %54 = vector.load %arg5[%c0_35, %c0_36, %c0_37] : memref<1x2x4xf32, #tpu.memory_space<vmem>>, vector<1x2x4xf32>
      tpu.vector_store %arg5[%c0_35, %c0_36, %c0_37], %53 {strides = array<i32>} : memref<1x2x4xf32, #tpu.memory_space<vmem>>, vector<1x2x4xf32>,
    } else {
    }
    return
  }
  func.func @transform_0(%arg0: i32, %arg1: i32) -> (i32, i32, i32) {
    %c1_i32 = arith.constant 1 : i32
    %0 = arith.muli %arg0, %c1_i32 : i32
    %1 = arith.addi %0, %arg1 : i32
    %c0_i32 = arith.constant 0 : i32
    %c0_i32_0 = arith.constant 0 : i32
    %c0_i32_1 = arith.constant 0 : i32
    return %c0_i32, %c0_i32_0, %1 : i32, i32, i32
  }
  func.func @transform_1(%arg0: i32, %arg1: i32) -> (i32, i32, i32) {
    %c1_i32 = arith.constant 1 : i32
    %0 = arith.muli %arg0, %c1_i32 : i32
    %1 = arith.addi %0, %arg1 : i32
    %c0_i32 = arith.constant 0 : i32
    %c0_i32_0 = arith.constant 0 : i32
    %c0_i32_1 = arith.constant 0 : i32
    return %c0_i32, %c0_i32_0, %1 : i32, i32, i32
  }
  func.func @transform_2(%arg0: i32, %arg1: i32) -> (i32, i32, i32) {
    %c0_i32 = arith.constant 0 : i32
    %c0_i32_0 = arith.constant 0 : i32
    %c0_i32_1 = arith.constant 0 : i32
    return %arg0, %c0_i32, %c0_i32_0 : i32, i32, i32
  }
  func.func @transform_3(%arg0: i32, %arg1: i32) -> (i32, i32, i32) {
    %c0_i32 = arith.constant 0 : i32
    %c0_i32_0 = arith.constant 0 : i32
    %c0_i32_1 = arith.constant 0 : i32
    return %arg0, %c0_i32, %c0_i32_0 : i32, i32, i32
  }
}

</mosaic_0001>

<llo_original>
// kernel: tpu_custom_call.1
$region0: #{tpu_custom_call.1}
  #allocation0 [shape = 'u32[]', space=smem, size = 0x4, offset = 0x4, fixed_abs, tag = 'smem constant byte address 0x4 - core index']
  #allocation1 [shape = 'u32[144,128]{1,0:T(1,128)}', space=vmem, size = 0x12000, scoped, tag = 'internal scratch']
  #allocation2 [shape = 'f32[2,4,128]{2,1,0:T(4,128)}', space=vmem, size = 0x1000, scoped, tag = 'scratch operand']
  #allocation3 [shape = 'f32[2,4,128]{2,1,0:T(4,128)}', space=vmem, size = 0x1000, scoped, tag = 'scratch operand']
  %s0 = inlined_call_operand.hbm [shape: f32[2,4,256], index: 0, kind: input, shape index: {}]
  %s1 = inlined_call_operand.vmem [shape: s8[2,1,256], index: 1, kind: input, shape index: {}]
  %s2 = inlined_call_operand.hbm [shape: f32[1,2,4], index: 2, kind: output, shape index: {0}]
  %s3 = inlined_call_operand.hbm [shape: f32[1,2,4], index: 3, kind: output, shape index: {1}]
  %4 = xla_tuple %s2, %s3
  %s5 = sld [smem:[#allocation0]]
  $region38: #{tpu_custom_call.1} parent=0
    _
  %s7 = ssub.s32 1, %s5
  %s8 = scalar_select 0, %s7, %s5
  $region1: #{tpu_custom_call.1} parent=0
    #allocation4 [shape = 'u8[8192]{0}', space=vmem, size = 0x2000, scoped, tag = 'input window, operand 0, single buffered']
    #allocation5 [shape = 's32[1]{0}', space=sflag, size = 0x4, scoped, tag = 'scoped memory for tpu_custom_call.1']
    #allocation6 [shape = 's32[1]{0}', space=sflag, size = 0x4, scoped, tag = 'scoped memory for tpu_custom_call.1']
    #allocation7 [shape = 'u8[1024]{0}', space=vmem, size = 0x400, scoped, tag = 'output window, operand 0, single buffered']
    #allocation8 [shape = 'u8[1024]{0}', space=vmem, size = 0x400, scoped, tag = 'output window, operand 1, single buffered']
    #allocation9 [shape = 's32[1]{0}', space=sflag, size = 0x4, scoped, tag = 'scoped memory for tpu_custom_call.1']
    %9 = vsyncpa [#allocation5], 0
    %10 = vsyncpa [#allocation6], 0
    %11 = vsyncpa [#allocation9], 0
    // Predicated region
    $region2: #{tpu_custom_call.1} parent=1 // pred_check
      _
    $region3: #{tpu_custom_call.1} parent=1 // pred_check_branch
      %13 = sbr.rel (0) target = $region5
    $region4: #{tpu_custom_call.1} parent=1 // pred_region
      %s14 = sadd.s32 0, 0
      %s15 = smul.u32 2, %s14
      %s17 = ssub.s32 256, 256
      %18 = vsyncadd [#allocation5], %s17
      %s19 = smul.addr %s15, 64
      %s20 = scalar_lea.hbm %s0, %s19
      %s21 = sshll.u32 [#allocation4], 4
      %s22 = int_to_ptr.vmem [resolvable:$true] %s21
      %27 = dma.hbm_to_vmem [thread:$0]  %s20, 256, %s22, [#allocation5], 128, 128, 8
    $region5: #{tpu_custom_call.1} parent=1 // pred_fallthru
      _
    // Predicated region
    $region6: #{tpu_custom_call.1} parent=1 // pred_check
      _
    $region7: #{tpu_custom_call.1} parent=1 // pred_check_branch
      %29 = sbr.rel (0) target = $region9
    $region8: #{tpu_custom_call.1} parent=1 // pred_region
      %s30 = sadd.s32 0, 0
      %s31 = smul.u32 2, %s30
      %p32 = scmp.lt.s32.totalorder %s31, 1
      %s33 = scalar_select %p32, %s31, 1
      %s34 = scalar_lea.vmem %s1, %s33
      %s35 = sadd.s32 0, 0
      %s36 = smul.u32 2, %s35
    $region9: #{tpu_custom_call.1} parent=1 // pred_fallthru
      _
    // Predicated region
    $region10: #{tpu_custom_call.1} parent=1 // pred_check
      _
    $region11: #{tpu_custom_call.1} parent=1 // pred_check_branch
      %38 = sbr.rel (0) target = $region13
    $region12: #{tpu_custom_call.1} parent=1 // pred_region
      %39 = dma.done [#allocation5], 256
    $region13: #{tpu_custom_call.1} parent=1 // pred_fallthru
      _
    %s40 = sadd.s32 0, 0
    %s41 = smul.u32 2, %s40
    %p42 = scmp.lt.s32.totalorder %s41, 1
    %s43 = scalar_select %p42, %s41, 1
    %s44 = scalar_lea.vmem %s1, %s43
    %s45 = sadd.s32 0, 0
    %s46 = smul.u32 2, %s45
    %s47 = sadd.s32 0, 0
    %s48 = smul.u32 2, %s47
    %p49 = scmp.lt.s32.totalorder %s48, 1
    %s50 = scalar_select %p49, %s48, 1
    %s51 = scalar_lea.vmem %s1, %s50
    %s52 = sadd.s32 0, 0
    %s53 = smul.u32 2, %s52
    %p54 = scmp.eq.s32.totalorder 0, 0
    // Predicated region
    $region14: #{tpu_custom_call.1} parent=1 // pred_check
      %p55 = pneg %p54
    $region15: #{tpu_custom_call.1} parent=1 // pred_check_branch
      %57 = sbr.rel (%p55) target = $region17
    $region16: #{tpu_custom_call.1} parent=1 // pred_region
      %58 = vst [vmem:[#allocation2] sm:$0xf] 0.0
      %59 = vst [vmem:[#allocation2 + $0x4] sm:$0xf] 0.0
      %60 = vst [vmem:[#allocation3] sm:$0xf] 0.0
      %61 = vst [vmem:[#allocation3 + $0x4] sm:$0xf] 0.0
    $region17: #{tpu_custom_call.1} parent=1 // pred_fallthru
      _
    %v62 = vlaneseq
    %v63 = vshrl.u32 %v62, 7
    %v64 = vld [vmem:[#allocation4] sm:$0xff]
    %v65 = vld [vmem:[#allocation4 + $0x8] sm:$0xff]
    %v66 = vld [vmem:[%s51] sm:$0x3]
    %v67 = vld [vmem:[%s51 + $0x2] sm:$0x3]
    %v68 = vunpack.c.0.s8 %v66
    %v69 = vunpack.c.0.s8 %v67
    %v72 = vcombine.high %v64, %v64
    %v73 = vcombine.high %v65, %v65
    %vm76 = vcmask 1043456
    %v77 = vsel %vm76, %v64, -inf
    %v78 = vrot.slane %v77, 4
    %v79 = vmax.f32 %v77, %v78
    %v80 = vrot.slane %v79, 2
    %v81 = vmax.f32 %v79, %v80
    %v82 = vrot.slane %v81, 1
    %v83 = vmax.f32 %v81, %v82
    %v84 = vsel %vm76, %v72, -inf
    %v85 = vrot.slane %v84, 4
    %v86 = vmax.f32 %v84, %v85
    %v87 = vrot.slane %v86, 2
    %v88 = vmax.f32 %v86, %v87
    %v89 = vrot.slane %v88, 1
    %v90 = vmax.f32 %v88, %v89
    %v91 = vsel %vm76, %v65, -inf
    %v92 = vrot.slane %v91, 4
    %v93 = vmax.f32 %v91, %v92
    %v94 = vrot.slane %v93, 2
    %v95 = vmax.f32 %v93, %v94
    %v96 = vrot.slane %v95, 1
    %v97 = vmax.f32 %v95, %v96
    %v98 = vsel %vm76, %v73, -inf
    %v99 = vrot.slane %v98, 4
    %v100 = vmax.f32 %v98, %v99
    %v101 = vrot.slane %v100, 2
    %v102 = vmax.f32 %v100, %v101
    %v103 = vrot.slane %v102, 1
    %v104 = vmax.f32 %v102, %v103
    %v109 = vcombine.low %v83, %v90
    %v110 = vcombine.low %v97, %v104
    %v113 = vsub.f32 %v64, %v109
    %v114 = vsub.f32 %v65, %v110
    %v115 = vmul.f32 %v113, 1.442695
    %v116 = vpow.pop %v115
    %v117 = vmul.f32 %v114, 1.442695
    %v118 = vpow.pop %v117
    %v121 = vcombine.high %v116, %v116
    %v122 = vcombine.high %v118, %v118
    %v125 = vsel %vm76, %v116, 0.0
    %v126 = vrot.slane %v125, 4
    %v127 = vadd.f32 %v125, %v126
    %v128 = vrot.slane %v127, 2
    %v129 = vadd.f32 %v127, %v128
    %v130 = vrot.slane %v129, 1
    %v131 = vadd.f32 %v129, %v130
    %v132 = vsel %vm76, %v121, 0.0
    %v133 = vrot.slane %v132, 4
    %v134 = vadd.f32 %v132, %v133
    %v135 = vrot.slane %v134, 2
    %v136 = vadd.f32 %v134, %v135
    %v137 = vrot.slane %v136, 1
    %v138 = vadd.f32 %v136, %v137
    %v139 = vsel %vm76, %v118, 0.0
    %v140 = vrot.slane %v139, 4
    %v141 = vadd.f32 %v139, %v140
    %v142 = vrot.slane %v141, 2
    %v143 = vadd.f32 %v141, %v142
    %v144 = vrot.slane %v143, 1
    %v145 = vadd.f32 %v143, %v144
    %v146 = vsel %vm76, %v122, 0.0
    %v147 = vrot.slane %v146, 4
    %v148 = vadd.f32 %v146, %v147
    %v149 = vrot.slane %v148, 2
    %v150 = vadd.f32 %v148, %v149
    %v151 = vrot.slane %v150, 1
    %v152 = vadd.f32 %v150, %v151
    %v153 = vrcp.pop %v131
    %v154 = vmul.f32 1.0, %v153
    %v155 = vrcp.pop %v138
    %v156 = vmul.f32 1.0, %v155
    %v157 = vrcp.pop %v145
    %v158 = vmul.f32 1.0, %v157
    %v159 = vrcp.pop %v152
    %v160 = vmul.f32 1.0, %v159
    %v161 = vlaneseq
    %v162 = vshrl.u32 %v161, 7
    %v163 = vsub.s32 0, %v162
    %v164 = vrot.slane %v68, %v163
    %v165 = vlaneseq
    %v166 = vshrl.u32 %v165, 7
    %v167 = vsub.s32 4, %v166
    %v168 = vrot.slane %v68, %v167
    %v169 = vlaneseq
    %v170 = vshrl.u32 %v169, 7
    %v171 = vsub.s32 0, %v170
    %v172 = vrot.slane %v69, %v171
    %v173 = vlaneseq
    %v174 = vshrl.u32 %v173, 7
    %v175 = vsub.s32 4, %v174
    %v176 = vrot.slane %v69, %v175
    %v177 = vlaneseq
    %v178 = vshrl.u32 %v177, 7
    %v179 = vsub.s32 0, %v178
    %v180 = vrot.slane %v164, %v179
    %v181 = vlaneseq
    %v182 = vshrl.u32 %v181, 7
    %v183 = vsub.s32 0, %v182
    %v184 = vrot.slane %v168, %v183
    %v185 = vlaneseq
    %v186 = vshrl.u32 %v185, 7
    %v187 = vsub.s32 0, %v186
    %v188 = vrot.slane %v172, %v187
    %v189 = vlaneseq
    %v190 = vshrl.u32 %v189, 7
    %v191 = vsub.s32 0, %v190
    %v192 = vrot.slane %v176, %v191
    %vm193 = vcmp.eq.s32.totalorder %v180, %v63
    %vm194 = vcmp.eq.s32.totalorder %v184, %v63
    %vm195 = vcmp.eq.s32.totalorder %v188, %v63
    %vm196 = vcmp.eq.s32.totalorder %v192, %v63
    %v201 = vcombine.low %v154, %v156
    %v202 = vcombine.low %v158, %v160
    %v205 = vmul.f32 %v116, %v201
    %v206 = vmul.f32 %v118, %v202
    %v209 = vcombine.high %v205, %v205
    %v210 = vcombine.high %v206, %v206
    %v213 = vsel %vm193, %v205, 0.0
    %v214 = vsel %vm194, %v209, 0.0
    %v215 = vsel %vm195, %v206, 0.0
    %v216 = vsel %vm196, %v210, 0.0
    %v217 = vadd.f32 %v205, 1.0
    %v218 = vadd.f32 %v206, 1.0
    %v221 = vcombine.high %v217, %v217
    %v222 = vcombine.high %v218, %v218
    %v225 = vsel %vm193, %v217, %v205
    %v226 = vsel %vm194, %v221, %v209
    %v227 = vsel %vm195, %v218, %v206
    %v228 = vsel %vm196, %v222, %v210
    %v229 = vadd.f32 %v213, 0.0
    %v230 = vadd.f32 %v215, 0.0
    %v231 = vadd.f32 %v225, 0.0
    %v232 = vadd.f32 %v227, 0.0
    %v233 = vadd.f32 %v229, %v214
    %v234 = vadd.f32 %v230, %v216
    %v235 = vadd.f32 %v231, %v226
    %v236 = vadd.f32 %v232, %v228
    %v237 = vld [vmem:[#allocation2] sm:$0xf]
    %v238 = vld [vmem:[#allocation2 + $0x4] sm:$0xf]
    %v239 = vadd.f32 %v237, %v233
    %v240 = vadd.f32 %v238, %v234
    %241 = vst [vmem:[#allocation2] sm:$0xf] %v239
    %242 = vst [vmem:[#allocation2 + $0x4] sm:$0xf] %v240
    %v243 = vld [vmem:[#allocation3] sm:$0xf]
    %v244 = vld [vmem:[#allocation3 + $0x4] sm:$0xf]
    %v245 = vadd.f32 %v243, %v235
    %v246 = vadd.f32 %v244, %v236
    %247 = vst [vmem:[#allocation3] sm:$0xf] %v245
    %248 = vst [vmem:[#allocation3 + $0x4] sm:$0xf] %v246
    // Predicated region
    $region18: #{tpu_custom_call.1} parent=1 // pred_check
      %p249 = pneg %p54
    $region19: #{tpu_custom_call.1} parent=1 // pred_check_branch
      %251 = sbr.rel (%p249) target = $region21
    $region20: #{tpu_custom_call.1} parent=1 // pred_region
      %v252 = vld [vmem:[#allocation2] sm:$0xf]
      %v253 = vld [vmem:[#allocation2 + $0x4] sm:$0xf]
      %v254 = vsel %vm76, %v252, 0.0
      %255 = vadd.xlane.f32.xlu0 %v254
      %v256 = vpop.xlane.xlu0 %255
      %v257 = vsel %vm76, %v253, 0.0
      %258 = vadd.xlane.f32.xlu0 %v257
      %v259 = vpop.xlane.xlu0 %258
      %v262 = vlaneseq
      %v263 = vand.u32 %v262, 127
      %v264 = vlaneseq
      %v265 = vshrl.u32 %v264, 7
      %v266 = vsub.s32 %v263, %v265
      %v267 = vrot.slane %v256, %v266
      %v268 = vlaneseq
      %v269 = vshrl.u32 %v268, 7
      %v270 = vsub.s32 %v263, %v269
      %v271 = vrot.slane %v259, %v270
      %vm272 = vcmask 1041409
      %v273 = vsel %vm272, %v271, %v267
      %vm275 = vcmask 25600
      %276 = vst.msk [vmem:[#allocation7] sm:$0x3] %vm275, %v273
      %v277 = vld [vmem:[#allocation3] sm:$0xf]
      %v278 = vld [vmem:[#allocation3 + $0x4] sm:$0xf]
      %v279 = vsel %vm76, %v277, 0.0
      %280 = vadd.xlane.f32.xlu0 %v279
      %v281 = vpop.xlane.xlu0 %280
      %v282 = vsel %vm76, %v278, 0.0
      %283 = vadd.xlane.f32.xlu0 %v282
      %v284 = vpop.xlane.xlu0 %283
      %v287 = vlaneseq
      %v288 = vshrl.u32 %v287, 7
      %v289 = vsub.s32 %v263, %v288
      %v290 = vrot.slane %v281, %v289
      %v291 = vlaneseq
      %v292 = vshrl.u32 %v291, 7
      %v293 = vsub.s32 %v263, %v292
      %v294 = vrot.slane %v284, %v293
      %v295 = vsel %vm272, %v294, %v290
      %297 = vst.msk [vmem:[#allocation8] sm:$0x3] %vm275, %v295
    $region21: #{tpu_custom_call.1} parent=1 // pred_fallthru
      _
    // Predicated region
    $region22: #{tpu_custom_call.1} parent=1 // pred_check
      _
    $region23: #{tpu_custom_call.1} parent=1 // pred_check_branch
      %299 = sbr.rel (0) target = $region25
    $region24: #{tpu_custom_call.1} parent=1 // pred_region
      %s301 = ssub.s32 32, 32
      %302 = vsyncadd [#allocation6], %s301
      %s304 = sshll.u32 [#allocation7], 4
      %s305 = int_to_ptr.vmem [resolvable:$true] %s304
      %307 = dma.vmem_to_hbm [thread:$0]  %s305, 32, %s2, [#allocation6]
    $region25: #{tpu_custom_call.1} parent=1 // pred_fallthru
      _
    // Predicated region
    $region26: #{tpu_custom_call.1} parent=1 // pred_check
      _
    $region27: #{tpu_custom_call.1} parent=1 // pred_check_branch
      %309 = sbr.rel (0) target = $region29
    $region28: #{tpu_custom_call.1} parent=1 // pred_region
      %s311 = ssub.s32 32, 32
      %312 = vsyncadd [#allocation9], %s311
      %s314 = sshll.u32 [#allocation8], 4
      %s315 = int_to_ptr.vmem [resolvable:$true] %s314
      %317 = dma.vmem_to_hbm [thread:$0]  %s315, 32, %s3, [#allocation9]
    $region29: #{tpu_custom_call.1} parent=1 // pred_fallthru
      _
    // Predicated region
    $region30: #{tpu_custom_call.1} parent=1 // pred_check
      _
    $region31: #{tpu_custom_call.1} parent=1 // pred_check_branch
      %319 = sbr.rel (0) target = $region33
    $region32: #{tpu_custom_call.1} parent=1 // pred_region
      %320 = dma.done [#allocation6], 32
    $region33: #{tpu_custom_call.1} parent=1 // pred_fallthru
      _
    // Predicated region
    $region34: #{tpu_custom_call.1} parent=1 // pred_check
      _
    $region35: #{tpu_custom_call.1} parent=1 // pred_check_branch
      %322 = sbr.rel (0) target = $region37
    $region36: #{tpu_custom_call.1} parent=1 // pred_region
      %323 = dma.done [#allocation9], 32
    $region37: #{tpu_custom_call.1} parent=1 // pred_fallthru
      _
    %324 = vsyncpa [#allocation5], 1
    %325 = vsyncpa [#allocation6], 1
    %326 = vsyncpa [#allocation9], 1

</llo_original>
